<compile_context>
chip_gen: v7x
topology: tpu7x:2x2x1
jax: 0.10.0
libtpu: 0.0.40
codegen_flags: <defaults>
</compile_context>

<pallas_src>
import functools

import jax
import jax.numpy as jnp
import numpy as np
from jax.experimental import pallas as pl
from jax.experimental.pallas import tpu as pltpu


def _round_up(a, b):
    return ((a + b - 1) // b) * b


def _conv_gemm_kernel(x_ref, w_ref, o_ref):
    """One fused GEMM tile: out = relu(W_aug @ X_tile)  (bias folded into W).

    x_ref: (1, CKp, tm)   bf16 im2col activation tile (lane axis = spatial)
    w_ref: (Cout, CKp)    bf16 weight (+bias column), fully resident
    o_ref: (1, Cout, tm)  f32 lane-dense output tile
    """
    acc = jnp.dot(w_ref[...], x_ref[0], preferred_element_type=jnp.float32)
    o_ref[0] = jnp.maximum(acc, 0.0)


def _choose_tile(HW, cap=8192):
    """Lane-aligned tile of the per-image spatial (out_h*out_w) axis.

    One tile when it fits under `cap` (single-TC chips gain nothing from
    splitting); otherwise the fewest equal lane-aligned tiles under the cap
    (long contiguous DMA rows).  Returns (tm, padded_HW).
    """
    LANE = 128
    hw128 = _round_up(max(HW, 1), LANE)
    if hw128 <= cap:
        return hw128, hw128
    ntiles = -(-hw128 // cap)                       # ceil
    tm = _round_up(-(-hw128 // ntiles), LANE)       # ceil, lane-aligned
    return tm, tm * ntiles


def _pallas_conv_gemm(x_gemm, w_gemm, *, tm):
    """x_gemm: (N, CKp, HW_pad) bf16, w_gemm: (Cout, CKp) bf16 -> (N, Cout, HW_pad) f32."""
    N, CKp, HW_pad = x_gemm.shape
    Cout = w_gemm.shape[0]
    assert HW_pad % tm == 0
    grid = (N, HW_pad // tm)

    cost = pl.CostEstimate(
        flops=2 * N * Cout * CKp * HW_pad,
        transcendentals=0,
        bytes_accessed=(x_gemm.size * x_gemm.dtype.itemsize
                        + w_gemm.size * w_gemm.dtype.itemsize
                        + N * Cout * HW_pad * 4),
    )

    return pl.pallas_call(
        _conv_gemm_kernel,
        out_shape=jax.ShapeDtypeStruct((N, Cout, HW_pad), jnp.float32),
        grid_spec=pltpu.PrefetchScalarGridSpec(
            num_scalar_prefetch=0,
            grid=grid,
            in_specs=[
                # Activation tile: streamed per grid step.
                pl.BlockSpec((1, CKp, tm), lambda n, m: (n, 0, m)),
                # Weight (+bias column): tiny, constant index -> stays resident.
                pl.BlockSpec((Cout, CKp), lambda n, m: (0, 0)),
            ],
            out_specs=pl.BlockSpec((1, Cout, tm), lambda n, m: (n, 0, m)),
        ),
        compiler_params=pltpu.CompilerParams(
            dimension_semantics=("parallel", "parallel")
        ),
        cost_estimate=cost,
    )(x_gemm, w_gemm)


def _apply_pad(x_nchw, pad_t, pad_b, pad_l, pad_r):
    """torch.nn.functional.pad 'constant' semantics: negative pads crop."""
    H, W = x_nchw.shape[2], x_nchw.shape[3]
    t0, t1 = max(-pad_t, 0), max(-pad_b, 0)
    l0, l1 = max(-pad_l, 0), max(-pad_r, 0)
    x = x_nchw[:, :, t0:H - t1, l0:W - l1]
    return jnp.pad(
        x,
        ((0, 0), (0, 0),
         (max(pad_t, 0), max(pad_b, 0)),
         (max(pad_l, 0), max(pad_r, 0))),
        mode="constant",
    )


def conv_block_forward(x_nchw, weight, bias, *, kernel_size, stride=1):
    """Matches ConvBlock.forward: F.pad (asymmetric if stride>1) -> Conv2d -> ReLU.

    x_nchw:  (N, Cin, H, W)      float32
    weight:  (Cout, Cin, K, K)   float32   (PyTorch Conv2d layout)
    bias:    (Cout,)             float32
    returns: (N, Cout, H_out, W_out) float32 (bf16 operands, f32 accumulation)
    """
    K = kernel_size
    P_ = K // 2
    if stride > 1:
        pad_l, pad_r, pad_t, pad_b = P_ - 1, P_, P_ - 1, P_
    else:
        pad_l, pad_r, pad_t, pad_b = P_, P_, P_, P_

    N, Cin, H, W = x_nchw.shape
    Cout = weight.shape[0]

    # Cast once to bf16; padded zeros stay exact.
    x_pad = _apply_pad(x_nchw.astype(jnp.bfloat16), pad_t, pad_b, pad_l, pad_r)
    Hp, Wp = x_pad.shape[2], x_pad.shape[3]
    out_h = (Hp - K) // stride + 1
    out_w = (Wp - K) // stride + 1
    HW = out_h * out_w
    CK = Cin * K * K

    # im2col directly in NCHW: each (kh, kw) tap is a plain strided slice of
    # the padded input (no per-tap transpose), reshaped and concatenated once.
    # Contraction-row ordering is (kh, kw, cin).
    taps = []
    for kh in range(K):
        for kw in range(K):
            sl = x_pad[:, :,
                       kh: kh + (out_h - 1) * stride + 1: stride,
                       kw: kw + (out_w - 1) * stride + 1: stride]
            taps.append(sl.reshape(N, Cin, HW))
    # Bias folded into the GEMM through an extra all-ones contraction row.
    taps.append(jnp.ones((N, 1, HW), dtype=jnp.bfloat16))
    x_gemm = jnp.concatenate(taps, axis=1)                    # (N, CK+1, HW)

    # Weight: (Cout, Cin, K, K) -> (Cout, K, K, Cin) -> (Cout, CK); column
    # ordering (kh, kw, cin) matches x_gemm rows.  Bias is the extra column.
    w_gemm = jnp.transpose(weight, (0, 2, 3, 1)).reshape(Cout, CK)
    w_gemm = jnp.concatenate([w_gemm, bias.reshape(Cout, 1)], axis=1)
    w_gemm = w_gemm.astype(jnp.bfloat16)                      # (Cout, CK+1)

    # Pad contraction dim to a multiple of 16 (bf16 sublane packing); zero
    # rows/columns are inert.
    CKp = _round_up(CK + 1, 16)
    if CKp != CK + 1:
        x_gemm = jnp.pad(x_gemm, ((0, 0), (0, CKp - (CK + 1)), (0, 0)))
        w_gemm = jnp.pad(w_gemm, ((0, 0), (0, CKp - (CK + 1))))

    # Lane-dense spatial tiling per image; padded columns are trimmed below.
    tm, HW_pad = _choose_tile(HW)
    if HW_pad != HW:
        x_gemm = jnp.pad(x_gemm, ((0, 0), (0, 0), (0, HW_pad - HW)))

    out = _pallas_conv_gemm(x_gemm, w_gemm, tm=tm)            # (N, Cout, HW_pad)
    return out[:, :, :HW].reshape(N, Cout, out_h, out_w)      # already NCHW


def _reference(x_nchw, weight, bias, *, kernel_size, stride):
    """Pure-JAX reference with the same bf16-operand / f32-accumulation numerics."""
    K = kernel_size
    P_ = K // 2
    if stride > 1:
        pad_l, pad_r, pad_t, pad_b = P_ - 1, P_, P_ - 1, P_
    else:
        pad_l, pad_r, pad_t, pad_b = P_, P_, P_, P_
    x_pad = _apply_pad(x_nchw.astype(jnp.bfloat16), pad_t, pad_b, pad_l, pad_r)
    out = jax.lax.conv_general_dilated(
        x_pad,
        weight.astype(jnp.bfloat16),
        window_strides=(stride, stride),
        padding="VALID",
        dimension_numbers=("NCHW", "OIHW", "NCHW"),
        preferred_element_type=jnp.float32,
    )
    out = out + bias.astype(jnp.bfloat16).astype(jnp.float32).reshape(1, -1, 1, 1)
    return jnp.maximum(out, 0.0)


if __name__ == "__main__":
    key = jax.random.PRNGKey(0)
    k_x, k_w, k_b = jax.random.split(key, 3)

    # Shapes consistent with ConvBlock(num_inp_channels=4, num_out_fmaps=8,
    # kernel_size=3)
    N, Cin, H, W = 2, 4, 16, 16
    Cout, K = 8, 3

    x = jax.random.normal(k_x, (N, Cin, H, W), dtype=jnp.float32)
    fan_in = Cin * K * K
    bound = 1.0 / np.sqrt(fan_in)
    weight = jax.random.uniform(
        k_w, (Cout, Cin, K, K), minval=-bound, maxval=bound, dtype=jnp.float32
    )
    bias = jax.random.uniform(
        k_b, (Cout,), minval=-bound, maxval=bound, dtype=jnp.float32
    )

    ok = True
    for stride in (1, 2):
        fwd = jax.jit(
            functools.partial(conv_block_forward, kernel_size=K, stride=stride)
        )
        out = jax.block_until_ready(fwd(x, weight, bias))
        ref = jax.block_until_ready(
            _reference(x, weight, bias, kernel_size=K, stride=stride)
        )
        if out.shape != ref.shape or not np.allclose(
            np.asarray(out), np.asarray(ref), atol=1e-3, rtol=1e-3
        ):
            ok = False

    if ok:
        print("KERNEL_OK")
    else:
        print("KERNEL_MISMATCH")
</pallas_src>

<mosaic_0001>
module attributes {stable_mosaic.version = 11 : i64} {
  func.func @_conv_gemm_kernel(%arg0: i32, %arg1: i32, %arg2: memref<1x48x256xbf16, #tpu.memory_space<vmem>>, %arg3: memref<8x48xbf16, #tpu.memory_space<vmem>>, %arg4: memref<1x8x256xf32, #tpu.memory_space<vmem>>) attributes {dimension_semantics = [#tpu.dimension_semantics<parallel>, #tpu.dimension_semantics<parallel>], iteration_bounds = array<i64: 2, 1>, scalar_prefetch = 0 : i64, scratch_operands = 0 : i64, tpu.core_type = #tpu.core_type<tc>, window_params = [{transform_indices = @transform_0, window_bounds = array<i64: 1, 48, 256>}, {pipeline_mode = #tpu.pipeline_mode<synchronous>, transform_indices = @transform_1, window_bounds = array<i64: 8, 48>}, {transform_indices = @transform_2, window_bounds = array<i64: 1, 8, 256>}]} {
    %c0 = arith.constant 0 : index
    %c0_0 = arith.constant 0 : index
    %0 = vector.load %arg3[%c0, %c0_0] : memref<8x48xbf16, #tpu.memory_space<vmem>>, vector<8x48xbf16>
    %c0_1 = arith.constant 0 : index
    %c0_2 = arith.constant 0 : index
    %c0_3 = arith.constant 0 : index
    %1 = vector.load %arg2[%c0_1, %c0_2, %c0_3] : memref<1x48x256xbf16, #tpu.memory_space<vmem>>, vector<1x48x256xbf16>
    %2 = vector.shape_cast %1 : vector<1x48x256xbf16> to vector<48x256xbf16>
    %cst = arith.constant dense<0.000000e+00> : vector<8x256xf32>
    %3 = tpu.matmul %0, %2, %cst {dimension_numbers = #tpu.dot_dimension_numbers<[1], [0], [0], [1], [0, 0, 1, 1], [], []>} : vector<8x48xbf16>, vector<48x256xbf16>, vector<8x256xf32> -> vector<8x256xf32>
    %cst_4 = arith.constant 0.000000e+00 : f32
    %4 = vector.broadcast %cst_4 : f32 to vector<8x256xf32>
    %5 = arith.maximumf %3, %4 : vector<8x256xf32>
    %c0_5 = arith.constant 0 : index
    %c0_6 = arith.constant 0 : index
    %c0_7 = arith.constant 0 : index
    %6 = vector.load %arg4[%c0_5, %c0_6, %c0_7] : memref<1x8x256xf32, #tpu.memory_space<vmem>>, vector<1x8x256xf32>
    %7 = vector.shape_cast %6 : vector<1x8x256xf32> to vector<8x256xf32>
    %8 = vector.shape_cast %5 : vector<8x256xf32> to vector<1x8x256xf32>
    tpu.vector_store %arg4[%c0_5, %c0_6, %c0_7], %8 {strides = array<i32>} : memref<1x8x256xf32, #tpu.memory_space<vmem>>, vector<1x8x256xf32>,
    return
  }
  func.func @transform_0(%arg0: i32, %arg1: i32) -> (i32, i32, i32) {
    %c0_i32 = arith.constant 0 : i32
    %c0_i32_0 = arith.constant 0 : i32
    return %arg0, %c0_i32, %arg1 : i32, i32, i32
  }
  func.func @transform_1(%arg0: i32, %arg1: i32) -> (i32, i32) {
    %c0_i32 = arith.constant 0 : i32
    %c0_i32_0 = arith.constant 0 : i32
    %c0_i32_1 = arith.constant 0 : i32
    return %c0_i32, %c0_i32_0 : i32, i32
  }
  func.func @transform_2(%arg0: i32, %arg1: i32) -> (i32, i32, i32) {
    %c0_i32 = arith.constant 0 : i32
    %c0_i32_0 = arith.constant 0 : i32
    return %arg0, %c0_i32, %arg1 : i32, i32, i32
  }
}

</mosaic_0001>

<llo_original>
// kernel: conv_block_forward.1
$region0: #{conv_block_forward.1}
  #allocation0 [shape = 'u32[]', space=smem, size = 0x4, offset = 0x4, fixed_abs, tag = 'smem constant byte address 0x4 - core index']
  #allocation1 [shape = 'u32[144,128]{1,0:T(1,128)}', space=vmem, size = 0x12000, scoped, tag = 'internal scratch']
  %s0 = inlined_call_operand.vmem [shape: bf16[2,48,256], index: 0, kind: input, shape index: {}]
  %s1 = inlined_call_operand.vmem [shape: bf16[8,48], index: 1, kind: input, shape index: {}]
  %s2 = inlined_call_operand.vmem [shape: f32[2,8,256], index: 2, kind: output, shape index: {}]
  %s3 = sld [smem:[#allocation0]]
  $region41: #{conv_block_forward.1} parent=0
    _
  %s5 = ssub.s32 1, %s3
  %s6 = scalar_select 0, %s5, %s3
  loop: start=0, step=1, limit=4
  $region2: #{conv_block_forward.1} parent=0 // loop_pre_header
    _
  $region3: #{conv_block_forward.1} parent=0 // loop_header
    %s8 = sphi 0, %s12
    %p9 = scmp.ge.s32.totalorder %s8, 4
    %s15 = sphi 0, %s27
    %s16 = sphi 0, %s23
    %s17 = sphi 0, %s15
    %s18 = sphi 0, %s16
    %s19 = sphi 0, %s17
    %s20 = sphi 0, %s18
    %s32 = sphi 0, %s34
    %s35 = sphi 0, %s32
    %s36 = sphi 0, %s35
    %s52 = sphi 0, %s36
    %s56 = sphi 0, %s56
    %s58 = sphi 0, %s56
    %s59 = sphi 0, %s58
    %s73 = sphi 0, %s59
    %s81 = sphi 0, %s83
    %s84 = sphi 0, %s81
    %s85 = sphi 0, %s84
    %s101 = sphi 0, %s85
  $region4: #{conv_block_forward.1} parent=0 // loop_header_branch
    %11 = sbr.rel (%p9) target = $region8
  $region5: #{conv_block_forward.1} parent=0 // loop_body
    %s13 = ssub.s32 %s8, 1
    %s14 = ssub.s32 %s8, 2
    %s21 = sadd.s32 1, %s16
    %p22 = scmp.ge.s32.totalorder %s21, 1
    %s23 = scalar_select %p22, 0, %s21
    %s24 = sadd.s32 1, %s15
    %s25 = scalar_select %p22, %s24, %s15
    %p26 = scmp.ge.s32.totalorder %s25, 2
    %s27 = scalar_select %p26, 0, %s25
    %s28 = ssub.s32 %s15, %s27
    %s29 = ssub.s32 %s16, %s23
    %s30 = sor.u32 %s28, %s29
    %p31 = scmp.eq.s32.totalorder %s30, 0
    %s33 = sadd.s32 %s32, 1
    %s34 = scalar_select %p31, %s32, %s33
    %p37 = pneg %p31
    %p38 = scmp.eq.s32.totalorder %s8, 1
    %p39 = por %p37, %p38
    %p40 = scmp.ne.s32.totalorder %s32, %s35
    %p41 = scmp.eq.s32.totalorder %s8, 0
    %p42 = por %p40, %p41
    %p43 = scmp.ne.s32.totalorder %s32, %s35
    %p44 = scmp.eq.s32.totalorder %s13, 1
    %p45 = por %p43, %p44
    %p46 = scmp.ne.s32.totalorder %s35, %s36
    %p47 = scmp.eq.s32.totalorder %s13, 0
    %p48 = por %p46, %p47
    %p49 = scmp.ne.s32.totalorder %s35, %s36
    %p50 = scmp.eq.s32.totalorder %s14, 1
    %p51 = por %p49, %p50
    %p53 = scmp.ne.s32.totalorder %s36, %s52
    %p54 = scmp.eq.s32.totalorder %s14, 0
    %p55 = por %p53, %p54
    %s57 = sadd.s32 %s56, 1
    %p60 = scmp.eq.s32.totalorder %s8, 1
    %p61 = scmp.ne.s32.totalorder %s56, %s58
    %p62 = scmp.eq.s32.totalorder %s8, 0
    %p63 = por %p61, %p62
    %p64 = scmp.ne.s32.totalorder %s56, %s58
    %p65 = scmp.eq.s32.totalorder %s13, 1
    %p66 = por %p64, %p65
    %p67 = scmp.ne.s32.totalorder %s58, %s59
    %p68 = scmp.eq.s32.totalorder %s13, 0
    %p69 = por %p67, %p68
    %p70 = scmp.ne.s32.totalorder %s58, %s59
    %p71 = scmp.eq.s32.totalorder %s14, 1
    %p72 = por %p70, %p71
    %p74 = scmp.ne.s32.totalorder %s59, %s73
    %p75 = scmp.eq.s32.totalorder %s14, 0
    %p76 = por %p74, %p75
    %s77 = ssub.s32 %s15, %s27
    %s78 = ssub.s32 %s16, %s23
    %s79 = sor.u32 %s77, %s78
    %p80 = scmp.eq.s32.totalorder %s79, 0
    %s82 = sadd.s32 %s81, 1
    %s83 = scalar_select %p80, %s81, %s82
    %p86 = pneg %p80
    %p87 = scmp.eq.s32.totalorder %s8, 1
    %p88 = por %p86, %p87
    %p89 = scmp.ne.s32.totalorder %s81, %s84
    %p90 = scmp.eq.s32.totalorder %s8, 0
    %p91 = por %p89, %p90
    %p92 = scmp.ne.s32.totalorder %s81, %s84
    %p93 = scmp.eq.s32.totalorder %s13, 1
    %p94 = por %p92, %p93
    %p95 = scmp.ne.s32.totalorder %s84, %s85
    %p96 = scmp.eq.s32.totalorder %s13, 0
    %p97 = por %p95, %p96
    %p98 = scmp.ne.s32.totalorder %s84, %s85
    %p99 = scmp.eq.s32.totalorder %s14, 1
    %p100 = por %p98, %p99
    %p102 = scmp.ne.s32.totalorder %s85, %s101
    %p103 = scmp.eq.s32.totalorder %s14, 0
    %p104 = por %p102, %p103
    %p105 = scmp.le.s32.totalorder 1, %s8
    %p106 = scmp.lt.s32.totalorder %s8, 3
    %p107 = pnand %p105, %p106
    %p108 = pneg %p107
    // Predicated region
    $region9: #{conv_block_forward.1} parent=5 // pred_check
      _
    $region10: #{conv_block_forward.1} parent=5 // pred_check_branch
      %110 = sbr.rel (%p107) target = $region12
    $region11: #{conv_block_forward.1} parent=5 // pred_region
      %s111 = ssub.s32 %s8, 1
      // Predicated region
      $region13: #{conv_block_forward.1} parent=11 // pred_check
        %p112 = pneg %p69
      $region14: #{conv_block_forward.1} parent=11 // pred_check_branch
        %114 = sbr.rel (%p112) target = $region16
      $region15: #{conv_block_forward.1} parent=11 // pred_region
        _
      $region16: #{conv_block_forward.1} parent=11 // pred_fallthru
        _
    $region12: #{conv_block_forward.1} parent=5 // pred_fallthru
      _
    %p115 = scmp.lt.s32.totalorder %s8, 2
    // Predicated region
    $region17: #{conv_block_forward.1} parent=5 // pred_check
      %p116 = pneg %p115
    $region18: #{conv_block_forward.1} parent=5 // pred_check_branch
      %118 = sbr.rel (%p116) target = $region20
    $region19: #{conv_block_forward.1} parent=5 // pred_region
      // Predicated region
      $region21: #{conv_block_forward.1} parent=19 // pred_check
        %p119 = pneg %p42
      $region22: #{conv_block_forward.1} parent=19 // pred_check_branch
        %121 = sbr.rel (%p119) target = $region24
      $region23: #{conv_block_forward.1} parent=19 // pred_region
        %s122 = smul.u32 2, %s16
        %p123 = scmp.lt.s32.totalorder %s15, 1
        %s124 = scalar_select %p123, %s15, 1
        %p125 = scmp.lt.s32.totalorder %s122, 1
        %s126 = scalar_select %p125, %s122, 1
        %s127 = smul.addr %s124, 12
        %s128 = sadd.s32 %s126, %s127
        %s129 = smul.addr %s128, 4
        %s130 = scalar_lea.vmem %s0, %s129
        %s131 = smul.u32 2, %s16
      $region24: #{conv_block_forward.1} parent=19 // pred_fallthru
        _
    $region20: #{conv_block_forward.1} parent=5 // pred_fallthru
      _
    %p132 = scmp.le.s32.totalorder 1, %s8
    %p133 = scmp.lt.s32.totalorder %s8, 3
    %p134 = pnand %p132, %p133
    %p135 = pneg %p134
    // Predicated region
    $region25: #{conv_block_forward.1} parent=5 // pred_check
      _
    $region26: #{conv_block_forward.1} parent=5 // pred_check_branch
      %137 = sbr.rel (%p134) target = $region28
    $region27: #{conv_block_forward.1} parent=5 // pred_region
      %s138 = ssub.s32 %s8, 1
      %s139 = smul.u32 2, %s18
      %p140 = scmp.lt.s32.totalorder %s17, 1
      %s141 = scalar_select %p140, %s17, 1
      %p142 = scmp.lt.s32.totalorder %s139, 1
      %s143 = scalar_select %p142, %s139, 1
      %s144 = smul.addr %s141, 12
      %s145 = sadd.s32 %s143, %s144
      %s146 = smul.addr %s145, 4
      %s147 = scalar_lea.vmem %s0, %s146
      %p148 = pneg %p48
      %p149 = pneg %p45
      %p150 = pneg %p69
      %p151 = pneg %p66
      %p152 = pneg %p97
      %p153 = pneg %p94
      %s154 = smul.u32 2, %s18
      %p155 = scmp.lt.s32.totalorder %s17, 1
      %s156 = scalar_select %p155, %s17, 1
      %p157 = scmp.lt.s32.totalorder %s154, 1
      %s158 = scalar_select %p157, %s154, 1
      %s159 = smul.addr %s156, 2
      %s160 = sadd.s32 %s158, %s159
      %s161 = smul.addr %s160, 8
      %s162 = scalar_lea.vmem %s2, %s161
      %s163 = smul.u32 2, %s18
      %p164 = scmp.lt.s32.totalorder %s17, 1
      %s165 = scalar_select %p164, %s17, 1
      %p166 = scmp.lt.s32.totalorder %s163, 1
      %s167 = scalar_select %p166, %s163, 1
      %s168 = smul.addr %s165, 12
      %s169 = sadd.s32 %s167, %s168
      %s170 = smul.addr %s169, 4
      %s171 = scalar_lea.vmem %s0, %s170
      %s172 = smul.u32 2, %s18
      %s173 = smul.u32 2, %s18
      %p174 = scmp.lt.s32.totalorder %s17, 1
      %s175 = scalar_select %p174, %s17, 1
      %p176 = scmp.lt.s32.totalorder %s173, 1
      %s177 = scalar_select %p176, %s173, 1
      %s178 = smul.addr %s175, 2
      %s179 = sadd.s32 %s177, %s178
      %s180 = smul.addr %s179, 8
      %s181 = scalar_lea.vmem %s2, %s180
      %s182 = smul.u32 2, %s18
      %v184 = vld [vmem:[%s1] sm:$0xf]
      %v185 = vld [vmem:[%s171] sm:$0xff]
      %v186 = vld [vmem:[%s171 + $0x8] sm:$0xff]
      %v187 = vld [vmem:[%s171 + $0x10] sm:$0xff]
      %v188 = vld [vmem:[%s171 + $0x18] sm:$0xff]
      %v189 = vld [vmem:[%s171 + $0x20] sm:$0xff]
      %v190 = vld [vmem:[%s171 + $0x28] sm:$0xff]
      %v197 = vunpack.c.l.b16 %v185
      %v198 = vunpack.c.h.b16 %v185
      %v199 = vunpack.c.l.b16 %v186
      %v200 = vunpack.c.h.b16 %v186
      %v201 = vunpack.c.l.b16 %v187
      %v202 = vunpack.c.h.b16 %v187
      %v203 = vunpack.c.l.b16 %v188
      %v204 = vunpack.c.h.b16 %v188
      %v205 = vunpack.c.l.b16 %v189
      %v206 = vunpack.c.h.b16 %v189
      %v207 = vunpack.c.l.b16 %v190
      %v208 = vunpack.c.h.b16 %v190
      %v209 = vpack.c.b16 %v199, %v197
      %v210 = vpack.c.b16 %v200, %v198
      %v211 = vpack.c.b16 %v203, %v201
      %v212 = vpack.c.b16 %v204, %v202
      %v213 = vpack.c.b16 %v207, %v205
      %v214 = vpack.c.b16 %v208, %v206
      %vm221 = vcmask 392192
      %v223 = vsel %vm221, %v184, 0
      %225 = vmatprep.subr.bf16.mxu0 %v210
      %226 = vmatpush1.bf16.msra.mxu0 %v209
      %227 = vmatprep.subr.bf16.mxu0 %v212
      %228 = vmatpush1.bf16.msra.mxu0 %v211
      %229 = vmatprep.subr.bf16.mxu0 %v214
      %230 = vmatpush1.bf16.msra.mxu0 %v213
      %231 = vmatprep.subr.bf16.mxu0 0
      %232 = vmatpush1.bf16.msra.mxu0 0
      %233 = vmatprep.subr.bf16.mxu0 0
      %234 = vmatpush1.bf16.msra.mxu0 0
      %235 = vmatprep.subr.bf16.mxu0 0
      %236 = vmatpush1.bf16.msra.mxu0 0
      %237 = vmatprep.subr.bf16.mxu0 0
      %238 = vmatpush1.bf16.msra.mxu0 0
      %239 = vmatprep.subr.bf16.mxu0 0
      %240 = vmatpush1.bf16.msra.mxu0 0
      %241 = vmatprep.subr.bf16.mxu0 0
      %242 = vmatpush1.bf16.msra.mxu0 0
      %243 = vmatprep.subr.bf16.mxu0 0
      %244 = vmatpush1.bf16.msra.mxu0 0
      %245 = vmatprep.subr.bf16.mxu0 0
      %246 = vmatpush1.bf16.msra.mxu0 0
      %247 = vmatprep.subr.bf16.mxu0 0
      %248 = vmatpush1.bf16.msra.mxu0 0
      %249 = vmatprep.subr.bf16.mxu0 0
      %250 = vmatpush1.bf16.msra.mxu0 0
      %251 = vmatprep.subr.bf16.mxu0 0
      %252 = vmatpush1.bf16.msra.mxu0 0
      %253 = vmatprep.subr.bf16.mxu0 0
      %254 = vmatpush1.bf16.msra.mxu0 0
      %255 = vmatprep.subr.bf16.mxu0 0
      %256 = vmatpush1.bf16.msra.mxu0 0
      %257 = vmatprep.mubr.bf16.mxu0 0
      %258 = vmatmul.mubr.bf16.gmra.mrb[0].mxu0 %v223
      %v259 = vpop.f32.mrb[0].mxu0
      %v260 = vadd.f32 0.0, %v259
      %v261 = vpop.f32.mrb[0].mxu0
      %v262 = vadd.f32 0.0, %v261
      %v263 = vpop.f32.mrb[0].mxu0
      %v264 = vpop.f32.mrb[0].mxu0
      %265 = vdwg.mxu0
      %v266 = vmax.f32 %v260, 0.0
      %v267 = vmax.f32 %v262, 0.0
      %268 = vst [vmem:[%s181] sm:$0xff] %v266
      %269 = vst [vmem:[%s181 + $0x8] sm:$0xff] %v267
      %s270 = smul.u32 2, %s18
      %p271 = scmp.lt.s32.totalorder %s17, 1
      %s272 = scalar_select %p271, %s17, 1
      %p273 = scmp.lt.s32.totalorder %s270, 1
      %s274 = scalar_select %p273, %s270, 1
      %s275 = smul.addr %s272, 2
      %s276 = sadd.s32 %s274, %s275
      %s277 = smul.addr %s276, 8
      %s278 = scalar_lea.vmem %s2, %s277
      // Predicated region
      $region29: #{conv_block_forward.1} parent=27 // pred_check
        %p279 = pneg %p94
      $region30: #{conv_block_forward.1} parent=27 // pred_check_branch
        %281 = sbr.rel (%p279) target = $region32
      $region31: #{conv_block_forward.1} parent=27 // pred_region
        %s282 = smul.u32 2, %s18
      $region32: #{conv_block_forward.1} parent=27 // pred_fallthru
        _
    $region28: #{conv_block_forward.1} parent=5 // pred_fallthru
      _
    %p283 = scmp.le.s32.totalorder 2, %s8
    // Predicated region
    $region33: #{conv_block_forward.1} parent=5 // pred_check
      %p284 = pneg %p283
    $region34: #{conv_block_forward.1} parent=5 // pred_check_branch
      %286 = sbr.rel (%p284) target = $region36
    $region35: #{conv_block_forward.1} parent=5 // pred_region
      %s287 = ssub.s32 %s8, 2
      // Predicated region
      $region37: #{conv_block_forward.1} parent=35 // pred_check
        %p288 = pneg %p100
      $region38: #{conv_block_forward.1} parent=35 // pred_check_branch
        %290 = sbr.rel (%p288) target = $region40
      $region39: #{conv_block_forward.1} parent=35 // pred_region
        %s291 = smul.u32 2, %s20
        %p292 = scmp.lt.s32.totalorder %s19, 1
        %s293 = scalar_select %p292, %s19, 1
        %p294 = scmp.lt.s32.totalorder %s291, 1
        %s295 = scalar_select %p294, %s291, 1
        %s296 = smul.addr %s293, 2
        %s297 = sadd.s32 %s295, %s296
        %s298 = smul.addr %s297, 8
        %s299 = scalar_lea.vmem %s2, %s298
      $region40: #{conv_block_forward.1} parent=35 // pred_fallthru
        _
    $region36: #{conv_block_forward.1} parent=5 // pred_fallthru
      _
  $region6: #{conv_block_forward.1} parent=0 // loop_footer
    %s12 = sadd.s32 1, %s8
  $region7: #{conv_block_forward.1} parent=0 // loop_footer_branch
    %7 = sbr.rel target = $region3
  $region8: #{conv_block_forward.1} parent=0 // loop_exit
    _

</llo_original>
